<compile_context>
chip_gen: v7x
topology: tpu7x:2x2x1
jax: 0.10.0
libtpu: 0.0.40
codegen_flags: <defaults>
</compile_context>

<pallas_src>
import jax
import jax.numpy as jnp
from jax.experimental import pallas as pl
from jax.experimental.pallas import tpu as pltpu

DECAY_RATE = 0.8    # Node(decay_rate=0.8) default
NOISE_STD = 0.01    # torch.distributions.Normal(0, 0.01)


def node_forward_kernel(x_ref, w_ref, c_ref, noise_ref, new_c_ref, out_ref):
    x = x_ref[...]                                            # (TM, N) f32

    # charges = decay * (charges + x + noise*x); charges[charges < 0] = 0
    c = DECAY_RATE * (c_ref[...] + x * (1.0 + noise_ref[...]))
    new_c_ref[...] = jnp.maximum(c, 0.0)                      # single vmax

    # output_i = sum_j x[i,j] * w[i,j]  -- XLU cross-lane reduce (no MXU,
    # no transposed RHS, exact f32 on every chip generation).
    out_ref[...] = jnp.sum(x * w_ref[...], axis=-1, keepdims=True)


def _node_forward(x, weights, charges, noise, *, tm=512):
    """Batched Node.forward for M nodes with N connections each.

    Args:
      x, weights, charges, noise: (M, N) float32; noise ~ Normal(0, 0.01).
    Returns:
      (per-node outputs, shape (M,); updated charges, shape (M, N))
    """
    m, n = x.shape
    tm = min(tm, m)
    assert m % tm == 0, (m, tm)

    row_block = pl.BlockSpec((tm, n), lambda i: (i, 0))
    out_block = pl.BlockSpec((tm, 1), lambda i: (i, 0))

    new_charges, out_col = pl.pallas_call(
        node_forward_kernel,
        grid=(m // tm,),
        in_specs=[row_block, row_block, row_block, row_block],
        out_specs=(row_block, out_block),
        out_shape=(
            jax.ShapeDtypeStruct((m, n), jnp.float32),   # updated charges
            jax.ShapeDtypeStruct((m, 1), jnp.float32),   # per-node outputs
        ),
        input_output_aliases={2: 0},     # charges -> new_charges (in-place)
        compiler_params=pltpu.CompilerParams(
            dimension_semantics=("parallel",)),           # shards on v7x 2 TCs
    )(x, weights, charges, noise)
    return out_col[:, 0], new_charges


# Donate `charges` so the pallas-level alias becomes a true in-place update.
node_forward = jax.jit(_node_forward, donate_argnums=(2,),
                       static_argnames=("tm",))


if __name__ == "__main__":
    M, N = 1024, 128    # 1024 nodes x 128 connections, 512-row blocks -> grid (2,)
    key = jax.random.PRNGKey(0)
    kx, kw, kc, kn = jax.random.split(key, 4)

    # Deterministic synthetic state.  Node.add() initializes weights/charges to
    # zeros; small random values exercise the reduction and the clamp branch
    # (semantics identical).
    x = jax.random.normal(kx, (M, N), dtype=jnp.float32)
    weights = jax.random.normal(kw, (M, N), dtype=jnp.float32) * 0.1
    charges = jax.random.normal(kc, (M, N), dtype=jnp.float32) * 0.5
    noise = jax.random.normal(kn, (M, N), dtype=jnp.float32) * NOISE_STD

    # References computed BEFORE the call (charges is donated to the kernel).
    ref_out = jnp.sum(x * weights, axis=-1)                          # (M,)
    ref_charges = jnp.maximum(DECAY_RATE * (charges + x * (1.0 + noise)), 0.0)

    out, new_charges = node_forward(x, weights, charges, noise)
    jax.block_until_ready((out, new_charges))

    assert out.shape == (M,) and new_charges.shape == (M, N)
    assert jnp.allclose(out, ref_out, atol=1e-5, rtol=1e-5)
    assert jnp.allclose(new_charges, ref_charges, atol=1e-5, rtol=1e-5)
    assert bool(jnp.all(new_charges >= 0.0))

    # TODO(synk): in_spike()/correct_weights()/get_ratios()/get_uncertainty()
    # are Python object-graph traversal over connection lists (no tensor hot
    # path), so they are not lowered to Pallas.
    print("KERNEL_OK")
</pallas_src>

<mosaic_0001>
module attributes {stable_mosaic.version = 11 : i64} {
  func.func @node_forward_kernel(%arg0: i32, %arg1: memref<512x128xf32, #tpu.memory_space<vmem>>, %arg2: memref<512x128xf32, #tpu.memory_space<vmem>>, %arg3: memref<512x128xf32, #tpu.memory_space<vmem>>, %arg4: memref<512x128xf32, #tpu.memory_space<vmem>>, %arg5: memref<512x128xf32, #tpu.memory_space<vmem>>, %arg6: memref<512x1xf32, #tpu.memory_space<vmem>>) attributes {dimension_semantics = [#tpu.dimension_semantics<parallel>], iteration_bounds = array<i64: 2>, scalar_prefetch = 0 : i64, scratch_operands = 0 : i64, tpu.core_type = #tpu.core_type<tc>, window_params = [{transform_indices = @transform_0, window_bounds = array<i64: 512, 128>}, {transform_indices = @transform_1, window_bounds = array<i64: 512, 128>}, {transform_indices = @transform_2, window_bounds = array<i64: 512, 128>}, {transform_indices = @transform_3, window_bounds = array<i64: 512, 128>}, {transform_indices = @transform_4, window_bounds = array<i64: 512, 128>}, {transform_indices = @transform_5, window_bounds = array<i64: 512, 1>}]} {
    %c0 = arith.constant 0 : index
    %c0_0 = arith.constant 0 : index
    %0 = vector.load %arg1[%c0, %c0_0] : memref<512x128xf32, #tpu.memory_space<vmem>>, vector<512x128xf32>
    %c0_1 = arith.constant 0 : index
    %c0_2 = arith.constant 0 : index
    %1 = vector.load %arg3[%c0_1, %c0_2] : memref<512x128xf32, #tpu.memory_space<vmem>>, vector<512x128xf32>
    %c0_3 = arith.constant 0 : index
    %c0_4 = arith.constant 0 : index
    %2 = vector.load %arg4[%c0_3, %c0_4] : memref<512x128xf32, #tpu.memory_space<vmem>>, vector<512x128xf32>
    %cst = arith.constant 1.000000e+00 : f32
    %3 = vector.broadcast %cst : f32 to vector<512x128xf32>
    %4 = arith.addf %3, %2 : vector<512x128xf32>
    %5 = arith.mulf %0, %4 : vector<512x128xf32>
    %6 = arith.addf %1, %5 : vector<512x128xf32>
    %cst_5 = arith.constant 8.000000e-01 : f32
    %7 = vector.broadcast %cst_5 : f32 to vector<512x128xf32>
    %8 = arith.mulf %7, %6 : vector<512x128xf32>
    %cst_6 = arith.constant 0.000000e+00 : f32
    %9 = vector.broadcast %cst_6 : f32 to vector<512x128xf32>
    %10 = arith.maximumf %8, %9 : vector<512x128xf32>
    %c0_7 = arith.constant 0 : index
    %c0_8 = arith.constant 0 : index
    %11 = vector.load %arg5[%c0_7, %c0_8] : memref<512x128xf32, #tpu.memory_space<vmem>>, vector<512x128xf32>
    tpu.vector_store %arg5[%c0_7, %c0_8], %10 {strides = array<i32>} : memref<512x128xf32, #tpu.memory_space<vmem>>, vector<512x128xf32>,
    %c0_9 = arith.constant 0 : index
    %c0_10 = arith.constant 0 : index
    %12 = vector.load %arg2[%c0_9, %c0_10] : memref<512x128xf32, #tpu.memory_space<vmem>>, vector<512x128xf32>
    %13 = arith.mulf %0, %12 : vector<512x128xf32>
    %cst_11 = arith.constant dense<0.000000e+00> : vector<512xf32>
    %14 = vector.multi_reduction <add>, %13, %cst_11 [1] : vector<512x128xf32> to vector<512xf32>
    %15 = vector.shape_cast %14 : vector<512xf32> to vector<512x1xf32>
    %c0_12 = arith.constant 0 : index
    %c0_13 = arith.constant 0 : index
    %16 = vector.load %arg6[%c0_12, %c0_13] : memref<512x1xf32, #tpu.memory_space<vmem>>, vector<512x1xf32>
    tpu.vector_store %arg6[%c0_12, %c0_13], %15 {strides = array<i32>} : memref<512x1xf32, #tpu.memory_space<vmem>>, vector<512x1xf32>,
    return
  }
  func.func @transform_0(%arg0: i32) -> (i32, i32) {
    %c0_i32 = arith.constant 0 : i32
    %c0_i32_0 = arith.constant 0 : i32
    return %arg0, %c0_i32 : i32, i32
  }
  func.func @transform_1(%arg0: i32) -> (i32, i32) {
    %c0_i32 = arith.constant 0 : i32
    %c0_i32_0 = arith.constant 0 : i32
    return %arg0, %c0_i32 : i32, i32
  }
  func.func @transform_2(%arg0: i32) -> (i32, i32) {
    %c0_i32 = arith.constant 0 : i32
    %c0_i32_0 = arith.constant 0 : i32
    return %arg0, %c0_i32 : i32, i32
  }
  func.func @transform_3(%arg0: i32) -> (i32, i32) {
    %c0_i32 = arith.constant 0 : i32
    %c0_i32_0 = arith.constant 0 : i32
    return %arg0, %c0_i32 : i32, i32
  }
  func.func @transform_4(%arg0: i32) -> (i32, i32) {
    %c0_i32 = arith.constant 0 : i32
    %c0_i32_0 = arith.constant 0 : i32
    return %arg0, %c0_i32 : i32, i32
  }
  func.func @transform_5(%arg0: i32) -> (i32, i32) {
    %c0_i32 = arith.constant 0 : i32
    %c0_i32_0 = arith.constant 0 : i32
    return %arg0, %c0_i32 : i32, i32
  }
}

</mosaic_0001>

<llo_original>
// kernel: _node_forward.1
$region0: #{_node_forward.1}
  #allocation0 [shape = 'u32[]', space=smem, size = 0x4, offset = 0x4, fixed_abs, tag = 'smem constant byte address 0x4 - core index']
  #allocation1 [shape = 'u32[144,128]{1,0:T(1,128)}', space=vmem, size = 0x12000, scoped, tag = 'internal scratch']
  %s0 = inlined_call_operand.hbm [shape: f32[1024,128], index: 0, kind: input, shape index: {}]
  %s1 = inlined_call_operand.hbm [shape: f32[1024,128], index: 1, kind: input, shape index: {}]
  %s2 = inlined_call_operand.hbm [shape: f32[1024,128], index: 2, kind: input, shape index: {}, may-alias: {2,4}]
  %s3 = inlined_call_operand.hbm [shape: f32[1024,128], index: 3, kind: input, shape index: {}]
  %s4 = inlined_call_operand.hbm [shape: f32[1024,128], index: 4, kind: output, shape index: {0}, may-alias: {2,4}]
  %s5 = inlined_call_operand.vmem [shape: f32[1024,1], index: 5, kind: output, shape index: {1}]
  %6 = xla_tuple %s4, %s5
  %s7 = sld [smem:[#allocation0]]
  $region73: #{_node_forward.1} parent=0
    _
  %s9 = ssub.s32 1, %s7
  %s10 = scalar_select 0, %s9, %s7
  $region1: #{_node_forward.1} parent=0
    #allocation2 [shape = 'u8[524288]{0}', space=vmem, size = 0x80000, scoped, tag = 'input window, operand 0']
    #allocation3 [shape = 's32[2]{0}', space=sflag, size = 0x8, scoped, tag = 'scoped memory for _node_forward.1']
    #allocation4 [shape = 's32[2]{0}', space=sflag, size = 0x8, scoped, tag = 'scoped memory for _node_forward.1']
    #allocation5 [shape = 'u8[524288]{0}', space=vmem, size = 0x80000, scoped, tag = 'input window, operand 1']
    #allocation6 [shape = 's32[2]{0}', space=sflag, size = 0x8, scoped, tag = 'scoped memory for _node_forward.1']
    #allocation7 [shape = 'u8[524288]{0}', space=vmem, size = 0x80000, scoped, tag = 'input window, operand 2']
    #allocation8 [shape = 'u8[524288]{0}', space=vmem, size = 0x80000, scoped, tag = 'input window, operand 3']
    #allocation9 [shape = 's32[2]{0}', space=sflag, size = 0x8, scoped, tag = 'scoped memory for _node_forward.1']
    #allocation10 [shape = 'u8[524288]{0}', space=vmem, size = 0x80000, scoped, tag = 'output window, operand 0']
    %11 = vsyncpa [#allocation3], 0
    %s12 = scalar_lea.sflag [#allocation3], 1
    %13 = vsyncpa %s12, 0
    %14 = vsyncpa [#allocation6], 0
    %s15 = scalar_lea.sflag [#allocation6], 1
    %16 = vsyncpa %s15, 0
    %17 = vsyncpa [#allocation9], 0
    %s18 = scalar_lea.sflag [#allocation9], 1
    %19 = vsyncpa %s18, 0
    %20 = vsyncpa [#allocation4], 0
    %s21 = scalar_lea.sflag [#allocation4], 1
    %22 = vsyncpa %s21, 0
    loop: start=0, step=1, limit=4
    $region2: #{_node_forward.1} parent=1 // loop_pre_header
      _
    $region3: #{_node_forward.1} parent=1 // loop_header
      %s24 = sphi 0, %s28
      %p25 = scmp.ge.s32.totalorder %s24, 4
      %s34 = sphi 0, %s36
      %s37 = sphi 0, %s34
      %s38 = sphi 0, %s37
      %s54 = sphi 0, %s38
      %s60 = sphi 0, %s62
      %s63 = sphi 0, %s60
      %s64 = sphi 0, %s63
      %s80 = sphi 0, %s64
      %s86 = sphi 0, %s88
      %s89 = sphi 0, %s86
      %s90 = sphi 0, %s89
      %s106 = sphi 0, %s90
      %s112 = sphi 0, %s114
      %s115 = sphi 0, %s112
      %s116 = sphi 0, %s115
      %s132 = sphi 0, %s116
      %s138 = sphi 0, %s140
      %s141 = sphi 0, %s138
      %s142 = sphi 0, %s141
      %s158 = sphi 0, %s142
      %s164 = sphi 0, %s166
      %s167 = sphi 0, %s164
      %s168 = sphi 0, %s167
      %s184 = sphi 0, %s168
    $region4: #{_node_forward.1} parent=1 // loop_header_branch
      %27 = sbr.rel (%p25) target = $region8
    $region5: #{_node_forward.1} parent=1 // loop_body
      %s29 = ssub.s32 %s24, 1
      %s30 = ssub.s32 %s24, 2
      %s31 = sadd.s32 %s24, 1
      %s32 = ssub.s32 %s24, %s31
      %p33 = scmp.eq.s32.totalorder %s32, 0
      %s35 = sadd.s32 %s34, 1
      %s36 = scalar_select %p33, %s34, %s35
      %p39 = pneg %p33
      %p40 = scmp.eq.s32.totalorder %s24, 1
      %p41 = por %p39, %p40
      %p42 = scmp.ne.s32.totalorder %s34, %s37
      %p43 = scmp.eq.s32.totalorder %s24, 0
      %p44 = por %p42, %p43
      %p45 = scmp.ne.s32.totalorder %s34, %s37
      %p46 = scmp.eq.s32.totalorder %s29, 1
      %p47 = por %p45, %p46
      %p48 = scmp.ne.s32.totalorder %s37, %s38
      %p49 = scmp.eq.s32.totalorder %s29, 0
      %p50 = por %p48, %p49
      %p51 = scmp.ne.s32.totalorder %s37, %s38
      %p52 = scmp.eq.s32.totalorder %s30, 1
      %p53 = por %p51, %p52
      %p55 = scmp.ne.s32.totalorder %s38, %s54
      %p56 = scmp.eq.s32.totalorder %s30, 0
      %p57 = por %p55, %p56
      %s58 = ssub.s32 %s24, %s31
      %p59 = scmp.eq.s32.totalorder %s58, 0
      %s61 = sadd.s32 %s60, 1
      %s62 = scalar_select %p59, %s60, %s61
      %p65 = pneg %p59
      %p66 = scmp.eq.s32.totalorder %s24, 1
      %p67 = por %p65, %p66
      %p68 = scmp.ne.s32.totalorder %s60, %s63
      %p69 = scmp.eq.s32.totalorder %s24, 0
      %p70 = por %p68, %p69
      %p71 = scmp.ne.s32.totalorder %s60, %s63
      %p72 = scmp.eq.s32.totalorder %s29, 1
      %p73 = por %p71, %p72
      %p74 = scmp.ne.s32.totalorder %s63, %s64
      %p75 = scmp.eq.s32.totalorder %s29, 0
      %p76 = por %p74, %p75
      %p77 = scmp.ne.s32.totalorder %s63, %s64
      %p78 = scmp.eq.s32.totalorder %s30, 1
      %p79 = por %p77, %p78
      %p81 = scmp.ne.s32.totalorder %s64, %s80
      %p82 = scmp.eq.s32.totalorder %s30, 0
      %p83 = por %p81, %p82
      %s84 = ssub.s32 %s24, %s31
      %p85 = scmp.eq.s32.totalorder %s84, 0
      %s87 = sadd.s32 %s86, 1
      %s88 = scalar_select %p85, %s86, %s87
      %p91 = pneg %p85
      %p92 = scmp.eq.s32.totalorder %s24, 1
      %p93 = por %p91, %p92
      %p94 = scmp.ne.s32.totalorder %s86, %s89
      %p95 = scmp.eq.s32.totalorder %s24, 0
      %p96 = por %p94, %p95
      %p97 = scmp.ne.s32.totalorder %s86, %s89
      %p98 = scmp.eq.s32.totalorder %s29, 1
      %p99 = por %p97, %p98
      %p100 = scmp.ne.s32.totalorder %s89, %s90
      %p101 = scmp.eq.s32.totalorder %s29, 0
      %p102 = por %p100, %p101
      %p103 = scmp.ne.s32.totalorder %s89, %s90
      %p104 = scmp.eq.s32.totalorder %s30, 1
      %p105 = por %p103, %p104
      %p107 = scmp.ne.s32.totalorder %s90, %s106
      %p108 = scmp.eq.s32.totalorder %s30, 0
      %p109 = por %p107, %p108
      %s110 = ssub.s32 %s24, %s31
      %p111 = scmp.eq.s32.totalorder %s110, 0
      %s113 = sadd.s32 %s112, 1
      %s114 = scalar_select %p111, %s112, %s113
      %p117 = pneg %p111
      %p118 = scmp.eq.s32.totalorder %s24, 1
      %p119 = por %p117, %p118
      %p120 = scmp.ne.s32.totalorder %s112, %s115
      %p121 = scmp.eq.s32.totalorder %s24, 0
      %p122 = por %p120, %p121
      %p123 = scmp.ne.s32.totalorder %s112, %s115
      %p124 = scmp.eq.s32.totalorder %s29, 1
      %p125 = por %p123, %p124
      %p126 = scmp.ne.s32.totalorder %s115, %s116
      %p127 = scmp.eq.s32.totalorder %s29, 0
      %p128 = por %p126, %p127
      %p129 = scmp.ne.s32.totalorder %s115, %s116
      %p130 = scmp.eq.s32.totalorder %s30, 1
      %p131 = por %p129, %p130
      %p133 = scmp.ne.s32.totalorder %s116, %s132
      %p134 = scmp.eq.s32.totalorder %s30, 0
      %p135 = por %p133, %p134
      %s136 = ssub.s32 %s24, %s31
      %p137 = scmp.eq.s32.totalorder %s136, 0
      %s139 = sadd.s32 %s138, 1
      %s140 = scalar_select %p137, %s138, %s139
      %p143 = pneg %p137
      %p144 = scmp.eq.s32.totalorder %s24, 1
      %p145 = por %p143, %p144
      %p146 = scmp.ne.s32.totalorder %s138, %s141
      %p147 = scmp.eq.s32.totalorder %s24, 0
      %p148 = por %p146, %p147
      %p149 = scmp.ne.s32.totalorder %s138, %s141
      %p150 = scmp.eq.s32.totalorder %s29, 1
      %p151 = por %p149, %p150
      %p152 = scmp.ne.s32.totalorder %s141, %s142
      %p153 = scmp.eq.s32.totalorder %s29, 0
      %p154 = por %p152, %p153
      %p155 = scmp.ne.s32.totalorder %s141, %s142
      %p156 = scmp.eq.s32.totalorder %s30, 1
      %p157 = por %p155, %p156
      %p159 = scmp.ne.s32.totalorder %s142, %s158
      %p160 = scmp.eq.s32.totalorder %s30, 0
      %p161 = por %p159, %p160
      %s162 = ssub.s32 %s24, %s31
      %p163 = scmp.eq.s32.totalorder %s162, 0
      %s165 = sadd.s32 %s164, 1
      %s166 = scalar_select %p163, %s164, %s165
      %p169 = pneg %p163
      %p170 = scmp.eq.s32.totalorder %s24, 1
      %p171 = por %p169, %p170
      %p172 = scmp.ne.s32.totalorder %s164, %s167
      %p173 = scmp.eq.s32.totalorder %s24, 0
      %p174 = por %p172, %p173
      %p175 = scmp.ne.s32.totalorder %s164, %s167
      %p176 = scmp.eq.s32.totalorder %s29, 1
      %p177 = por %p175, %p176
      %p178 = scmp.ne.s32.totalorder %s167, %s168
      %p179 = scmp.eq.s32.totalorder %s29, 0
      %p180 = por %p178, %p179
      %p181 = scmp.ne.s32.totalorder %s167, %s168
      %p182 = scmp.eq.s32.totalorder %s30, 1
      %p183 = por %p181, %p182
      %p185 = scmp.ne.s32.totalorder %s168, %s184
      %p186 = scmp.eq.s32.totalorder %s30, 0
      %p187 = por %p185, %p186
      %p188 = scmp.le.s32.totalorder 1, %s24
      %p189 = scmp.lt.s32.totalorder %s24, 3
      %p190 = pnand %p188, %p189
      %p191 = pneg %p190
      // Predicated region
      $region9: #{_node_forward.1} parent=5 // pred_check
        _
      $region10: #{_node_forward.1} parent=5 // pred_check_branch
        %193 = sbr.rel (%p190) target = $region12
      $region11: #{_node_forward.1} parent=5 // pred_region
        %s194 = ssub.s32 %s24, 1
      $region12: #{_node_forward.1} parent=5 // pred_fallthru
        _
      %p195 = scmp.lt.s32.totalorder %s24, 2
      // Predicated region
      $region13: #{_node_forward.1} parent=5 // pred_check
        %p196 = pneg %p195
      $region14: #{_node_forward.1} parent=5 // pred_check_branch
        %198 = sbr.rel (%p196) target = $region16
      $region15: #{_node_forward.1} parent=5 // pred_region
        // Predicated region
        $region17: #{_node_forward.1} parent=15 // pred_check
          %p199 = pneg %p44
        $region18: #{_node_forward.1} parent=15 // pred_check_branch
          %201 = sbr.rel (%p199) target = $region20
        $region19: #{_node_forward.1} parent=15 // pred_region
          %s202 = sand.u32 %s34, 1
          %s203 = scalar_lea.sflag [#allocation3], %s202
          %s204 = sand.u32 %s34, 1
          %s205 = smul.addr %s204, 512
          %s206 = scalar_lea.vmem [#allocation2], %s205
          %s207 = smul.u32 64, %s24
          %s209 = ssub.s32 8192, 8192
          %210 = vsyncadd %s203, %s209
          %s211 = smul.addr %s207, 128
          %s212 = scalar_lea.hbm %s0, %s211
          %s213 = sshll.u32 %s206, 4
          %s214 = int_to_ptr.vmem [resolvable:$true] %s213
          %219 = dma.hbm_to_vmem [thread:$0]  %s212, 8192, %s214, %s203, 128, 128, 8
        $region20: #{_node_forward.1} parent=15 // pred_fallthru
          _
        // Predicated region
        $region21: #{_node_forward.1} parent=15 // pred_check
          %p220 = pneg %p70
        $region22: #{_node_forward.1} parent=15 // pred_check_branch
          %222 = sbr.rel (%p220) target = $region24
        $region23: #{_node_forward.1} parent=15 // pred_region
          %s223 = sand.u32 %s24, 1
          %s224 = scalar_lea.sflag [#allocation6], %s223
          %s225 = sand.u32 %s60, 1
          %s226 = smul.addr %s225, 512
          %s227 = scalar_lea.vmem [#allocation5], %s226
          %s228 = smul.u32 64, %s24
          %s230 = ssub.s32 8192, 8192
          %231 = vsyncadd %s224, %s230
          %s232 = smul.addr %s228, 128
          %s233 = scalar_lea.hbm %s1, %s232
          %s234 = sshll.u32 %s227, 4
          %s235 = int_to_ptr.vmem [resolvable:$true] %s234
          %240 = dma.hbm_to_vmem [thread:$0]  %s233, 8192, %s235, %s224, 128, 128, 8
        $region24: #{_node_forward.1} parent=15 // pred_fallthru
          _
        // Predicated region
        $region25: #{_node_forward.1} parent=15 // pred_check
          %p241 = pneg %p96
        $region26: #{_node_forward.1} parent=15 // pred_check_branch
          %243 = sbr.rel (%p241) target = $region28
        $region27: #{_node_forward.1} parent=15 // pred_region
          %s244 = sand.u32 %s24, 1
          %s245 = scalar_lea.sflag [#allocation6], %s244
          %s246 = sand.u32 %s86, 1
          %s247 = smul.addr %s246, 512
          %s248 = scalar_lea.vmem [#allocation7], %s247
          %s249 = smul.u32 64, %s24
          %s251 = ssub.s32 8192, 8192
          %252 = vsyncadd %s245, %s251
          %s253 = smul.addr %s249, 128
          %s254 = scalar_lea.hbm %s2, %s253
          %s255 = sshll.u32 %s248, 4
          %s256 = int_to_ptr.vmem [resolvable:$true] %s255
          %261 = dma.hbm_to_vmem [thread:$0]  %s254, 8192, %s256, %s245, 128, 128, 8
        $region28: #{_node_forward.1} parent=15 // pred_fallthru
          _
        // Predicated region
        $region29: #{_node_forward.1} parent=15 // pred_check
          %p262 = pneg %p122
        $region30: #{_node_forward.1} parent=15 // pred_check_branch
          %264 = sbr.rel (%p262) target = $region32
        $region31: #{_node_forward.1} parent=15 // pred_region
          %s265 = sand.u32 %s112, 1
          %s266 = scalar_lea.sflag [#allocation9], %s265
          %s267 = sand.u32 %s112, 1
          %s268 = smul.addr %s267, 512
          %s269 = scalar_lea.vmem [#allocation8], %s268
          %s270 = smul.u32 64, %s24
          %s272 = ssub.s32 8192, 8192
          %273 = vsyncadd %s266, %s272
          %s274 = smul.addr %s270, 128
          %s275 = scalar_lea.hbm %s3, %s274
          %s276 = sshll.u32 %s269, 4
          %s277 = int_to_ptr.vmem [resolvable:$true] %s276
          %282 = dma.hbm_to_vmem [thread:$0]  %s275, 8192, %s277, %s266, 128, 128, 8
        $region32: #{_node_forward.1} parent=15 // pred_fallthru
          _
      $region16: #{_node_forward.1} parent=5 // pred_fallthru
        _
      %p283 = scmp.le.s32.totalorder 1, %s24
      %p284 = scmp.lt.s32.totalorder %s24, 3
      %p285 = pnand %p283, %p284
      %p286 = pneg %p285
      // Predicated region
      $region33: #{_node_forward.1} parent=5 // pred_check
        _
      $region34: #{_node_forward.1} parent=5 // pred_check_branch
        %288 = sbr.rel (%p285) target = $region36
      $region35: #{_node_forward.1} parent=5 // pred_region
        %s289 = ssub.s32 %s24, 1
        %s290 = sand.u32 %s37, 1
        %s291 = scalar_lea.sflag [#allocation3], %s290
        %s292 = sand.u32 %s37, 1
        %s293 = smul.addr %s292, 512
        %s294 = scalar_lea.vmem [#allocation2], %s293
        // Predicated region
        $region37: #{_node_forward.1} parent=35 // pred_check
          %p295 = pneg %p50
        $region38: #{_node_forward.1} parent=35 // pred_check_branch
          %297 = sbr.rel (%p295) target = $region40
        $region39: #{_node_forward.1} parent=35 // pred_region
          %298 = dma.done %s291, 8192
        $region40: #{_node_forward.1} parent=35 // pred_fallthru
          _
        %s299 = sand.u32 %s29, 1
        %s300 = scalar_lea.sflag [#allocation6], %s299
        %s301 = sand.u32 %s63, 1
        %s302 = smul.addr %s301, 512
        %s303 = scalar_lea.vmem [#allocation5], %s302
        // Predicated region
        $region41: #{_node_forward.1} parent=35 // pred_check
          %p304 = pneg %p76
        $region42: #{_node_forward.1} parent=35 // pred_check_branch
          %306 = sbr.rel (%p304) target = $region44
        $region43: #{_node_forward.1} parent=35 // pred_region
          %307 = dma.done %s300, 8192
        $region44: #{_node_forward.1} parent=35 // pred_fallthru
          _
        %s308 = sand.u32 %s29, 1
        %s309 = scalar_lea.sflag [#allocation6], %s308
        %s310 = sand.u32 %s89, 1
        %s311 = smul.addr %s310, 512
        %s312 = scalar_lea.vmem [#allocation7], %s311
        // Predicated region
        $region45: #{_node_forward.1} parent=35 // pred_check
          %p313 = pneg %p102
        $region46: #{_node_forward.1} parent=35 // pred_check_branch
          %315 = sbr.rel (%p313) target = $region48
        $region47: #{_node_forward.1} parent=35 // pred_region
          %316 = dma.done %s309, 8192
        $region48: #{_node_forward.1} parent=35 // pred_fallthru
          _
        %s317 = sand.u32 %s115, 1
        %s318 = scalar_lea.sflag [#allocation9], %s317
        %s319 = sand.u32 %s115, 1
        %s320 = smul.addr %s319, 512
        %s321 = scalar_lea.vmem [#allocation8], %s320
        // Predicated region
        $region49: #{_node_forward.1} parent=35 // pred_check
          %p322 = pneg %p128
        $region50: #{_node_forward.1} parent=35 // pred_check_branch
          %324 = sbr.rel (%p322) target = $region52
        $region51: #{_node_forward.1} parent=35 // pred_region
          %325 = dma.done %s318, 8192
        $region52: #{_node_forward.1} parent=35 // pred_fallthru
          _
        %s326 = sand.u32 %s37, 1
        %s327 = scalar_lea.sflag [#allocation3], %s326
        %s328 = sand.u32 %s37, 1
        %s329 = smul.addr %s328, 512
        %s330 = scalar_lea.vmem [#allocation2], %s329
        %p331 = pneg %p50
        %p332 = pneg %p47
        %s333 = sand.u32 %s29, 1
        %s334 = scalar_lea.sflag [#allocation6], %s333
        %s335 = sand.u32 %s63, 1
        %s336 = smul.addr %s335, 512
        %s337 = scalar_lea.vmem [#allocation5], %s336
        %p338 = pneg %p76
        %p339 = pneg %p73
        %s340 = sand.u32 %s29, 1
        %s341 = scalar_lea.sflag [#allocation6], %s340
        %s342 = sand.u32 %s89, 1
        %s343 = smul.addr %s342, 512
        %s344 = scalar_lea.vmem [#allocation7], %s343
        %p345 = pneg %p102
        %p346 = pneg %p99
        %s347 = sand.u32 %s115, 1
        %s348 = scalar_lea.sflag [#allocation9], %s347
        %s349 = sand.u32 %s115, 1
        %s350 = smul.addr %s349, 512
        %s351 = scalar_lea.vmem [#allocation8], %s350
        %p352 = pneg %p128
        %p353 = pneg %p125
        %p354 = pneg %p154
        %p355 = pneg %p151
        %s356 = sand.u32 %s141, 1
        %s357 = scalar_lea.sflag [#allocation4], %s356
        %s358 = sand.u32 %s141, 1
        %s359 = smul.addr %s358, 512
        %s360 = scalar_lea.vmem [#allocation10], %s359
        %p361 = pneg %p180
        %p362 = pneg %p177
        %s363 = smul.u32 64, %s29
        %p364 = scmp.lt.s32.totalorder %s363, 127
        %s365 = scalar_select %p364, %s363, 127
        %s366 = smul.addr %s365, 8
        %s367 = scalar_lea.vmem %s5, %s366
        %s368 = smul.u32 64, %s29
        %s369 = smul.u32 64, %s29
        %s370 = smul.u32 64, %s29
        %s371 = smul.u32 64, %s29
        %s372 = smul.u32 64, %s29
        %s373 = smul.u32 64, %s29
        %p374 = scmp.lt.s32.totalorder %s373, 127
        %s375 = scalar_select %p374, %s373, 127
        %s376 = smul.addr %s375, 8
        %s377 = scalar_lea.vmem %s5, %s376
        %s378 = smul.u32 64, %s29
        %v379 = vld [vmem:[%s294] sm:$0xff]
        %v380 = vld [vmem:[%s294 + $0x8] sm:$0xff]
        %v381 = vld [vmem:[%s294 + $0x10] sm:$0xff]
        %v382 = vld [vmem:[%s294 + $0x18] sm:$0xff]
        %v383 = vld [vmem:[%s294 + $0x20] sm:$0xff]
        %v384 = vld [vmem:[%s294 + $0x28] sm:$0xff]
        %v385 = vld [vmem:[%s294 + $0x30] sm:$0xff]
        %v386 = vld [vmem:[%s294 + $0x38] sm:$0xff]
        %v387 = vld [vmem:[%s294 + $0x40] sm:$0xff]
        %v388 = vld [vmem:[%s294 + $0x48] sm:$0xff]
        %v389 = vld [vmem:[%s294 + $0x50] sm:$0xff]
        %v390 = vld [vmem:[%s294 + $0x58] sm:$0xff]
        %v391 = vld [vmem:[%s294 + $0x60] sm:$0xff]
        %v392 = vld [vmem:[%s294 + $0x68] sm:$0xff]
        %v393 = vld [vmem:[%s294 + $0x70] sm:$0xff]
        %v394 = vld [vmem:[%s294 + $0x78] sm:$0xff]
        %v395 = vld [vmem:[%s294 + $0x80] sm:$0xff]
        %v396 = vld [vmem:[%s294 + $0x88] sm:$0xff]
        %v397 = vld [vmem:[%s294 + $0x90] sm:$0xff]
        %v398 = vld [vmem:[%s294 + $0x98] sm:$0xff]
        %v399 = vld [vmem:[%s294 + $0xa0] sm:$0xff]
        %v400 = vld [vmem:[%s294 + $0xa8] sm:$0xff]
        %v401 = vld [vmem:[%s294 + $0xb0] sm:$0xff]
        %v402 = vld [vmem:[%s294 + $0xb8] sm:$0xff]
        %v403 = vld [vmem:[%s294 + $0xc0] sm:$0xff]
        %v404 = vld [vmem:[%s294 + $0xc8] sm:$0xff]
        %v405 = vld [vmem:[%s294 + $0xd0] sm:$0xff]
        %v406 = vld [vmem:[%s294 + $0xd8] sm:$0xff]
        %v407 = vld [vmem:[%s294 + $0xe0] sm:$0xff]
        %v408 = vld [vmem:[%s294 + $0xe8] sm:$0xff]
        %v409 = vld [vmem:[%s294 + $0xf0] sm:$0xff]
        %v410 = vld [vmem:[%s294 + $0xf8] sm:$0xff]
        %v411 = vld [vmem:[%s294 + $0x100] sm:$0xff]
        %v412 = vld [vmem:[%s294 + $0x108] sm:$0xff]
        %v413 = vld [vmem:[%s294 + $0x110] sm:$0xff]
        %v414 = vld [vmem:[%s294 + $0x118] sm:$0xff]
        %v415 = vld [vmem:[%s294 + $0x120] sm:$0xff]
        %v416 = vld [vmem:[%s294 + $0x128] sm:$0xff]
        %v417 = vld [vmem:[%s294 + $0x130] sm:$0xff]
        %v418 = vld [vmem:[%s294 + $0x138] sm:$0xff]
        %v419 = vld [vmem:[%s294 + $0x140] sm:$0xff]
        %v420 = vld [vmem:[%s294 + $0x148] sm:$0xff]
        %v421 = vld [vmem:[%s294 + $0x150] sm:$0xff]
        %v422 = vld [vmem:[%s294 + $0x158] sm:$0xff]
        %v423 = vld [vmem:[%s294 + $0x160] sm:$0xff]
        %v424 = vld [vmem:[%s294 + $0x168] sm:$0xff]
        %v425 = vld [vmem:[%s294 + $0x170] sm:$0xff]
        %v426 = vld [vmem:[%s294 + $0x178] sm:$0xff]
        %v427 = vld [vmem:[%s294 + $0x180] sm:$0xff]
        %v428 = vld [vmem:[%s294 + $0x188] sm:$0xff]
        %v429 = vld [vmem:[%s294 + $0x190] sm:$0xff]
        %v430 = vld [vmem:[%s294 + $0x198] sm:$0xff]
        %v431 = vld [vmem:[%s294 + $0x1a0] sm:$0xff]
        %v432 = vld [vmem:[%s294 + $0x1a8] sm:$0xff]
        %v433 = vld [vmem:[%s294 + $0x1b0] sm:$0xff]
        %v434 = vld [vmem:[%s294 + $0x1b8] sm:$0xff]
        %v435 = vld [vmem:[%s294 + $0x1c0] sm:$0xff]
        %v436 = vld [vmem:[%s294 + $0x1c8] sm:$0xff]
        %v437 = vld [vmem:[%s294 + $0x1d0] sm:$0xff]
        %v438 = vld [vmem:[%s294 + $0x1d8] sm:$0xff]
        %v439 = vld [vmem:[%s294 + $0x1e0] sm:$0xff]
        %v440 = vld [vmem:[%s294 + $0x1e8] sm:$0xff]
        %v441 = vld [vmem:[%s294 + $0x1f0] sm:$0xff]
        %v442 = vld [vmem:[%s294 + $0x1f8] sm:$0xff]
        %v443 = vld [vmem:[%s312] sm:$0xff]
        %v444 = vld [vmem:[%s312 + $0x8] sm:$0xff]
        %v445 = vld [vmem:[%s312 + $0x10] sm:$0xff]
        %v446 = vld [vmem:[%s312 + $0x18] sm:$0xff]
        %v447 = vld [vmem:[%s312 + $0x20] sm:$0xff]
        %v448 = vld [vmem:[%s312 + $0x28] sm:$0xff]
        %v449 = vld [vmem:[%s312 + $0x30] sm:$0xff]
        %v450 = vld [vmem:[%s312 + $0x38] sm:$0xff]
        %v451 = vld [vmem:[%s312 + $0x40] sm:$0xff]
        %v452 = vld [vmem:[%s312 + $0x48] sm:$0xff]
        %v453 = vld [vmem:[%s312 + $0x50] sm:$0xff]
        %v454 = vld [vmem:[%s312 + $0x58] sm:$0xff]
        %v455 = vld [vmem:[%s312 + $0x60] sm:$0xff]
        %v456 = vld [vmem:[%s312 + $0x68] sm:$0xff]
        %v457 = vld [vmem:[%s312 + $0x70] sm:$0xff]
        %v458 = vld [vmem:[%s312 + $0x78] sm:$0xff]
        %v459 = vld [vmem:[%s312 + $0x80] sm:$0xff]
        %v460 = vld [vmem:[%s312 + $0x88] sm:$0xff]
        %v461 = vld [vmem:[%s312 + $0x90] sm:$0xff]
        %v462 = vld [vmem:[%s312 + $0x98] sm:$0xff]
        %v463 = vld [vmem:[%s312 + $0xa0] sm:$0xff]
        %v464 = vld [vmem:[%s312 + $0xa8] sm:$0xff]
        %v465 = vld [vmem:[%s312 + $0xb0] sm:$0xff]
        %v466 = vld [vmem:[%s312 + $0xb8] sm:$0xff]
        %v467 = vld [vmem:[%s312 + $0xc0] sm:$0xff]
        %v468 = vld [vmem:[%s312 + $0xc8] sm:$0xff]
        %v469 = vld [vmem:[%s312 + $0xd0] sm:$0xff]
        %v470 = vld [vmem:[%s312 + $0xd8] sm:$0xff]
        %v471 = vld [vmem:[%s312 + $0xe0] sm:$0xff]
        %v472 = vld [vmem:[%s312 + $0xe8] sm:$0xff]
        %v473 = vld [vmem:[%s312 + $0xf0] sm:$0xff]
        %v474 = vld [vmem:[%s312 + $0xf8] sm:$0xff]
        %v475 = vld [vmem:[%s312 + $0x100] sm:$0xff]
        %v476 = vld [vmem:[%s312 + $0x108] sm:$0xff]
        %v477 = vld [vmem:[%s312 + $0x110] sm:$0xff]
        %v478 = vld [vmem:[%s312 + $0x118] sm:$0xff]
        %v479 = vld [vmem:[%s312 + $0x120] sm:$0xff]
        %v480 = vld [vmem:[%s312 + $0x128] sm:$0xff]
        %v481 = vld [vmem:[%s312 + $0x130] sm:$0xff]
        %v482 = vld [vmem:[%s312 + $0x138] sm:$0xff]
        %v483 = vld [vmem:[%s312 + $0x140] sm:$0xff]
        %v484 = vld [vmem:[%s312 + $0x148] sm:$0xff]
        %v485 = vld [vmem:[%s312 + $0x150] sm:$0xff]
        %v486 = vld [vmem:[%s312 + $0x158] sm:$0xff]
        %v487 = vld [vmem:[%s312 + $0x160] sm:$0xff]
        %v488 = vld [vmem:[%s312 + $0x168] sm:$0xff]
        %v489 = vld [vmem:[%s312 + $0x170] sm:$0xff]
        %v490 = vld [vmem:[%s312 + $0x178] sm:$0xff]
        %v491 = vld [vmem:[%s312 + $0x180] sm:$0xff]
        %v492 = vld [vmem:[%s312 + $0x188] sm:$0xff]
        %v493 = vld [vmem:[%s312 + $0x190] sm:$0xff]
        %v494 = vld [vmem:[%s312 + $0x198] sm:$0xff]
        %v495 = vld [vmem:[%s312 + $0x1a0] sm:$0xff]
        %v496 = vld [vmem:[%s312 + $0x1a8] sm:$0xff]
        %v497 = vld [vmem:[%s312 + $0x1b0] sm:$0xff]
        %v498 = vld [vmem:[%s312 + $0x1b8] sm:$0xff]
        %v499 = vld [vmem:[%s312 + $0x1c0] sm:$0xff]
        %v500 = vld [vmem:[%s312 + $0x1c8] sm:$0xff]
        %v501 = vld [vmem:[%s312 + $0x1d0] sm:$0xff]
        %v502 = vld [vmem:[%s312 + $0x1d8] sm:$0xff]
        %v503 = vld [vmem:[%s312 + $0x1e0] sm:$0xff]
        %v504 = vld [vmem:[%s312 + $0x1e8] sm:$0xff]
        %v505 = vld [vmem:[%s312 + $0x1f0] sm:$0xff]
        %v506 = vld [vmem:[%s312 + $0x1f8] sm:$0xff]
        %v507 = vld [vmem:[%s321] sm:$0xff]
        %v508 = vld [vmem:[%s321 + $0x8] sm:$0xff]
        %v509 = vld [vmem:[%s321 + $0x10] sm:$0xff]
        %v510 = vld [vmem:[%s321 + $0x18] sm:$0xff]
        %v511 = vld [vmem:[%s321 + $0x20] sm:$0xff]
        %v512 = vld [vmem:[%s321 + $0x28] sm:$0xff]
        %v513 = vld [vmem:[%s321 + $0x30] sm:$0xff]
        %v514 = vld [vmem:[%s321 + $0x38] sm:$0xff]
        %v515 = vld [vmem:[%s321 + $0x40] sm:$0xff]
        %v516 = vld [vmem:[%s321 + $0x48] sm:$0xff]
        %v517 = vld [vmem:[%s321 + $0x50] sm:$0xff]
        %v518 = vld [vmem:[%s321 + $0x58] sm:$0xff]
        %v519 = vld [vmem:[%s321 + $0x60] sm:$0xff]
        %v520 = vld [vmem:[%s321 + $0x68] sm:$0xff]
        %v521 = vld [vmem:[%s321 + $0x70] sm:$0xff]
        %v522 = vld [vmem:[%s321 + $0x78] sm:$0xff]
        %v523 = vld [vmem:[%s321 + $0x80] sm:$0xff]
        %v524 = vld [vmem:[%s321 + $0x88] sm:$0xff]
        %v525 = vld [vmem:[%s321 + $0x90] sm:$0xff]
        %v526 = vld [vmem:[%s321 + $0x98] sm:$0xff]
        %v527 = vld [vmem:[%s321 + $0xa0] sm:$0xff]
        %v528 = vld [vmem:[%s321 + $0xa8] sm:$0xff]
        %v529 = vld [vmem:[%s321 + $0xb0] sm:$0xff]
        %v530 = vld [vmem:[%s321 + $0xb8] sm:$0xff]
        %v531 = vld [vmem:[%s321 + $0xc0] sm:$0xff]
        %v532 = vld [vmem:[%s321 + $0xc8] sm:$0xff]
        %v533 = vld [vmem:[%s321 + $0xd0] sm:$0xff]
        %v534 = vld [vmem:[%s321 + $0xd8] sm:$0xff]
        %v535 = vld [vmem:[%s321 + $0xe0] sm:$0xff]
        %v536 = vld [vmem:[%s321 + $0xe8] sm:$0xff]
        %v537 = vld [vmem:[%s321 + $0xf0] sm:$0xff]
        %v538 = vld [vmem:[%s321 + $0xf8] sm:$0xff]
        %v539 = vld [vmem:[%s321 + $0x100] sm:$0xff]
        %v540 = vld [vmem:[%s321 + $0x108] sm:$0xff]
        %v541 = vld [vmem:[%s321 + $0x110] sm:$0xff]
        %v542 = vld [vmem:[%s321 + $0x118] sm:$0xff]
        %v543 = vld [vmem:[%s321 + $0x120] sm:$0xff]
        %v544 = vld [vmem:[%s321 + $0x128] sm:$0xff]
        %v545 = vld [vmem:[%s321 + $0x130] sm:$0xff]
        %v546 = vld [vmem:[%s321 + $0x138] sm:$0xff]
        %v547 = vld [vmem:[%s321 + $0x140] sm:$0xff]
        %v548 = vld [vmem:[%s321 + $0x148] sm:$0xff]
        %v549 = vld [vmem:[%s321 + $0x150] sm:$0xff]
        %v550 = vld [vmem:[%s321 + $0x158] sm:$0xff]
        %v551 = vld [vmem:[%s321 + $0x160] sm:$0xff]
        %v552 = vld [vmem:[%s321 + $0x168] sm:$0xff]
        %v553 = vld [vmem:[%s321 + $0x170] sm:$0xff]
        %v554 = vld [vmem:[%s321 + $0x178] sm:$0xff]
        %v555 = vld [vmem:[%s321 + $0x180] sm:$0xff]
        %v556 = vld [vmem:[%s321 + $0x188] sm:$0xff]
        %v557 = vld [vmem:[%s321 + $0x190] sm:$0xff]
        %v558 = vld [vmem:[%s321 + $0x198] sm:$0xff]
        %v559 = vld [vmem:[%s321 + $0x1a0] sm:$0xff]
        %v560 = vld [vmem:[%s321 + $0x1a8] sm:$0xff]
        %v561 = vld [vmem:[%s321 + $0x1b0] sm:$0xff]
        %v562 = vld [vmem:[%s321 + $0x1b8] sm:$0xff]
        %v563 = vld [vmem:[%s321 + $0x1c0] sm:$0xff]
        %v564 = vld [vmem:[%s321 + $0x1c8] sm:$0xff]
        %v565 = vld [vmem:[%s321 + $0x1d0] sm:$0xff]
        %v566 = vld [vmem:[%s321 + $0x1d8] sm:$0xff]
        %v567 = vld [vmem:[%s321 + $0x1e0] sm:$0xff]
        %v568 = vld [vmem:[%s321 + $0x1e8] sm:$0xff]
        %v569 = vld [vmem:[%s321 + $0x1f0] sm:$0xff]
        %v570 = vld [vmem:[%s321 + $0x1f8] sm:$0xff]
        %v571 = vadd.f32 %v507, 1.0
        %v572 = vadd.f32 %v508, 1.0
        %v573 = vadd.f32 %v509, 1.0
        %v574 = vadd.f32 %v510, 1.0
        %v575 = vadd.f32 %v511, 1.0
        %v576 = vadd.f32 %v512, 1.0
        %v577 = vadd.f32 %v513, 1.0
        %v578 = vadd.f32 %v514, 1.0
        %v579 = vadd.f32 %v515, 1.0
        %v580 = vadd.f32 %v516, 1.0
        %v581 = vadd.f32 %v517, 1.0
        %v582 = vadd.f32 %v518, 1.0
        %v583 = vadd.f32 %v519, 1.0
        %v584 = vadd.f32 %v520, 1.0
        %v585 = vadd.f32 %v521, 1.0
        %v586 = vadd.f32 %v522, 1.0
        %v587 = vadd.f32 %v523, 1.0
        %v588 = vadd.f32 %v524, 1.0
        %v589 = vadd.f32 %v525, 1.0
        %v590 = vadd.f32 %v526, 1.0
        %v591 = vadd.f32 %v527, 1.0
        %v592 = vadd.f32 %v528, 1.0
        %v593 = vadd.f32 %v529, 1.0
        %v594 = vadd.f32 %v530, 1.0
        %v595 = vadd.f32 %v531, 1.0
        %v596 = vadd.f32 %v532, 1.0
        %v597 = vadd.f32 %v533, 1.0
        %v598 = vadd.f32 %v534, 1.0
        %v599 = vadd.f32 %v535, 1.0
        %v600 = vadd.f32 %v536, 1.0
        %v601 = vadd.f32 %v537, 1.0
        %v602 = vadd.f32 %v538, 1.0
        %v603 = vadd.f32 %v539, 1.0
        %v604 = vadd.f32 %v540, 1.0
        %v605 = vadd.f32 %v541, 1.0
        %v606 = vadd.f32 %v542, 1.0
        %v607 = vadd.f32 %v543, 1.0
        %v608 = vadd.f32 %v544, 1.0
        %v609 = vadd.f32 %v545, 1.0
        %v610 = vadd.f32 %v546, 1.0
        %v611 = vadd.f32 %v547, 1.0
        %v612 = vadd.f32 %v548, 1.0
        %v613 = vadd.f32 %v549, 1.0
        %v614 = vadd.f32 %v550, 1.0
        %v615 = vadd.f32 %v551, 1.0
        %v616 = vadd.f32 %v552, 1.0
        %v617 = vadd.f32 %v553, 1.0
        %v618 = vadd.f32 %v554, 1.0
        %v619 = vadd.f32 %v555, 1.0
        %v620 = vadd.f32 %v556, 1.0
        %v621 = vadd.f32 %v557, 1.0
        %v622 = vadd.f32 %v558, 1.0
        %v623 = vadd.f32 %v559, 1.0
        %v624 = vadd.f32 %v560, 1.0
        %v625 = vadd.f32 %v561, 1.0
        %v626 = vadd.f32 %v562, 1.0
        %v627 = vadd.f32 %v563, 1.0
        %v628 = vadd.f32 %v564, 1.0
        %v629 = vadd.f32 %v565, 1.0
        %v630 = vadd.f32 %v566, 1.0
        %v631 = vadd.f32 %v567, 1.0
        %v632 = vadd.f32 %v568, 1.0
        %v633 = vadd.f32 %v569, 1.0
        %v634 = vadd.f32 %v570, 1.0
        %v635 = vmul.f32 %v379, %v571
        %v636 = vmul.f32 %v380, %v572
        %v637 = vmul.f32 %v381, %v573
        %v638 = vmul.f32 %v382, %v574
        %v639 = vmul.f32 %v383, %v575
        %v640 = vmul.f32 %v384, %v576
        %v641 = vmul.f32 %v385, %v577
        %v642 = vmul.f32 %v386, %v578
        %v643 = vmul.f32 %v387, %v579
        %v644 = vmul.f32 %v388, %v580
        %v645 = vmul.f32 %v389, %v581
        %v646 = vmul.f32 %v390, %v582
        %v647 = vmul.f32 %v391, %v583
        %v648 = vmul.f32 %v392, %v584
        %v649 = vmul.f32 %v393, %v585
        %v650 = vmul.f32 %v394, %v586
        %v651 = vmul.f32 %v395, %v587
        %v652 = vmul.f32 %v396, %v588
        %v653 = vmul.f32 %v397, %v589
        %v654 = vmul.f32 %v398, %v590
        %v655 = vmul.f32 %v399, %v591
        %v656 = vmul.f32 %v400, %v592
        %v657 = vmul.f32 %v401, %v593
        %v658 = vmul.f32 %v402, %v594
        %v659 = vmul.f32 %v403, %v595
        %v660 = vmul.f32 %v404, %v596
        %v661 = vmul.f32 %v405, %v597
        %v662 = vmul.f32 %v406, %v598
        %v663 = vmul.f32 %v407, %v599
        %v664 = vmul.f32 %v408, %v600
        %v665 = vmul.f32 %v409, %v601
        %v666 = vmul.f32 %v410, %v602
        %v667 = vmul.f32 %v411, %v603
        %v668 = vmul.f32 %v412, %v604
        %v669 = vmul.f32 %v413, %v605
        %v670 = vmul.f32 %v414, %v606
        %v671 = vmul.f32 %v415, %v607
        %v672 = vmul.f32 %v416, %v608
        %v673 = vmul.f32 %v417, %v609
        %v674 = vmul.f32 %v418, %v610
        %v675 = vmul.f32 %v419, %v611
        %v676 = vmul.f32 %v420, %v612
        %v677 = vmul.f32 %v421, %v613
        %v678 = vmul.f32 %v422, %v614
        %v679 = vmul.f32 %v423, %v615
        %v680 = vmul.f32 %v424, %v616
        %v681 = vmul.f32 %v425, %v617
        %v682 = vmul.f32 %v426, %v618
        %v683 = vmul.f32 %v427, %v619
        %v684 = vmul.f32 %v428, %v620
        %v685 = vmul.f32 %v429, %v621
        %v686 = vmul.f32 %v430, %v622
        %v687 = vmul.f32 %v431, %v623
        %v688 = vmul.f32 %v432, %v624
        %v689 = vmul.f32 %v433, %v625
        %v690 = vmul.f32 %v434, %v626
        %v691 = vmul.f32 %v435, %v627
        %v692 = vmul.f32 %v436, %v628
        %v693 = vmul.f32 %v437, %v629
        %v694 = vmul.f32 %v438, %v630
        %v695 = vmul.f32 %v439, %v631
        %v696 = vmul.f32 %v440, %v632
        %v697 = vmul.f32 %v441, %v633
        %v698 = vmul.f32 %v442, %v634
        %v699 = vadd.f32 %v443, %v635
        %v700 = vadd.f32 %v444, %v636
        %v701 = vadd.f32 %v445, %v637
        %v702 = vadd.f32 %v446, %v638
        %v703 = vadd.f32 %v447, %v639
        %v704 = vadd.f32 %v448, %v640
        %v705 = vadd.f32 %v449, %v641
        %v706 = vadd.f32 %v450, %v642
        %v707 = vadd.f32 %v451, %v643
        %v708 = vadd.f32 %v452, %v644
        %v709 = vadd.f32 %v453, %v645
        %v710 = vadd.f32 %v454, %v646
        %v711 = vadd.f32 %v455, %v647
        %v712 = vadd.f32 %v456, %v648
        %v713 = vadd.f32 %v457, %v649
        %v714 = vadd.f32 %v458, %v650
        %v715 = vadd.f32 %v459, %v651
        %v716 = vadd.f32 %v460, %v652
        %v717 = vadd.f32 %v461, %v653
        %v718 = vadd.f32 %v462, %v654
        %v719 = vadd.f32 %v463, %v655
        %v720 = vadd.f32 %v464, %v656
        %v721 = vadd.f32 %v465, %v657
        %v722 = vadd.f32 %v466, %v658
        %v723 = vadd.f32 %v467, %v659
        %v724 = vadd.f32 %v468, %v660
        %v725 = vadd.f32 %v469, %v661
        %v726 = vadd.f32 %v470, %v662
        %v727 = vadd.f32 %v471, %v663
        %v728 = vadd.f32 %v472, %v664
        %v729 = vadd.f32 %v473, %v665
        %v730 = vadd.f32 %v474, %v666
        %v731 = vadd.f32 %v475, %v667
        %v732 = vadd.f32 %v476, %v668
        %v733 = vadd.f32 %v477, %v669
        %v734 = vadd.f32 %v478, %v670
        %v735 = vadd.f32 %v479, %v671
        %v736 = vadd.f32 %v480, %v672
        %v737 = vadd.f32 %v481, %v673
        %v738 = vadd.f32 %v482, %v674
        %v739 = vadd.f32 %v483, %v675
        %v740 = vadd.f32 %v484, %v676
        %v741 = vadd.f32 %v485, %v677
        %v742 = vadd.f32 %v486, %v678
        %v743 = vadd.f32 %v487, %v679
        %v744 = vadd.f32 %v488, %v680
        %v745 = vadd.f32 %v489, %v681
        %v746 = vadd.f32 %v490, %v682
        %v747 = vadd.f32 %v491, %v683
        %v748 = vadd.f32 %v492, %v684
        %v749 = vadd.f32 %v493, %v685
        %v750 = vadd.f32 %v494, %v686
        %v751 = vadd.f32 %v495, %v687
        %v752 = vadd.f32 %v496, %v688
        %v753 = vadd.f32 %v497, %v689
        %v754 = vadd.f32 %v498, %v690
        %v755 = vadd.f32 %v499, %v691
        %v756 = vadd.f32 %v500, %v692
        %v757 = vadd.f32 %v501, %v693
        %v758 = vadd.f32 %v502, %v694
        %v759 = vadd.f32 %v503, %v695
        %v760 = vadd.f32 %v504, %v696
        %v761 = vadd.f32 %v505, %v697
        %v762 = vadd.f32 %v506, %v698
        %v763 = vmul.f32 %v699, 0.8
        %v764 = vmul.f32 %v700, 0.8
        %v765 = vmul.f32 %v701, 0.8
        %v766 = vmul.f32 %v702, 0.8
        %v767 = vmul.f32 %v703, 0.8
        %v768 = vmul.f32 %v704, 0.8
        %v769 = vmul.f32 %v705, 0.8
        %v770 = vmul.f32 %v706, 0.8
        %v771 = vmul.f32 %v707, 0.8
        %v772 = vmul.f32 %v708, 0.8
        %v773 = vmul.f32 %v709, 0.8
        %v774 = vmul.f32 %v710, 0.8
        %v775 = vmul.f32 %v711, 0.8
        %v776 = vmul.f32 %v712, 0.8
        %v777 = vmul.f32 %v713, 0.8
        %v778 = vmul.f32 %v714, 0.8
        %v779 = vmul.f32 %v715, 0.8
        %v780 = vmul.f32 %v716, 0.8
        %v781 = vmul.f32 %v717, 0.8
        %v782 = vmul.f32 %v718, 0.8
        %v783 = vmul.f32 %v719, 0.8
        %v784 = vmul.f32 %v720, 0.8
        %v785 = vmul.f32 %v721, 0.8
        %v786 = vmul.f32 %v722, 0.8
        %v787 = vmul.f32 %v723, 0.8
        %v788 = vmul.f32 %v724, 0.8
        %v789 = vmul.f32 %v725, 0.8
        %v790 = vmul.f32 %v726, 0.8
        %v791 = vmul.f32 %v727, 0.8
        %v792 = vmul.f32 %v728, 0.8
        %v793 = vmul.f32 %v729, 0.8
        %v794 = vmul.f32 %v730, 0.8
        %v795 = vmul.f32 %v731, 0.8
        %v796 = vmul.f32 %v732, 0.8
        %v797 = vmul.f32 %v733, 0.8
        %v798 = vmul.f32 %v734, 0.8
        %v799 = vmul.f32 %v735, 0.8
        %v800 = vmul.f32 %v736, 0.8
        %v801 = vmul.f32 %v737, 0.8
        %v802 = vmul.f32 %v738, 0.8
        %v803 = vmul.f32 %v739, 0.8
        %v804 = vmul.f32 %v740, 0.8
        %v805 = vmul.f32 %v741, 0.8
        %v806 = vmul.f32 %v742, 0.8
        %v807 = vmul.f32 %v743, 0.8
        %v808 = vmul.f32 %v744, 0.8
        %v809 = vmul.f32 %v745, 0.8
        %v810 = vmul.f32 %v746, 0.8
        %v811 = vmul.f32 %v747, 0.8
        %v812 = vmul.f32 %v748, 0.8
        %v813 = vmul.f32 %v749, 0.8
        %v814 = vmul.f32 %v750, 0.8
        %v815 = vmul.f32 %v751, 0.8
        %v816 = vmul.f32 %v752, 0.8
        %v817 = vmul.f32 %v753, 0.8
        %v818 = vmul.f32 %v754, 0.8
        %v819 = vmul.f32 %v755, 0.8
        %v820 = vmul.f32 %v756, 0.8
        %v821 = vmul.f32 %v757, 0.8
        %v822 = vmul.f32 %v758, 0.8
        %v823 = vmul.f32 %v759, 0.8
        %v824 = vmul.f32 %v760, 0.8
        %v825 = vmul.f32 %v761, 0.8
        %v826 = vmul.f32 %v762, 0.8
        %v827 = vmax.f32 %v763, 0.0
        %v828 = vmax.f32 %v764, 0.0
        %v829 = vmax.f32 %v765, 0.0
        %v830 = vmax.f32 %v766, 0.0
        %v831 = vmax.f32 %v767, 0.0
        %v832 = vmax.f32 %v768, 0.0
        %v833 = vmax.f32 %v769, 0.0
        %v834 = vmax.f32 %v770, 0.0
        %v835 = vmax.f32 %v771, 0.0
        %v836 = vmax.f32 %v772, 0.0
        %v837 = vmax.f32 %v773, 0.0
        %v838 = vmax.f32 %v774, 0.0
        %v839 = vmax.f32 %v775, 0.0
        %v840 = vmax.f32 %v776, 0.0
        %v841 = vmax.f32 %v777, 0.0
        %v842 = vmax.f32 %v778, 0.0
        %v843 = vmax.f32 %v779, 0.0
        %v844 = vmax.f32 %v780, 0.0
        %v845 = vmax.f32 %v781, 0.0
        %v846 = vmax.f32 %v782, 0.0
        %v847 = vmax.f32 %v783, 0.0
        %v848 = vmax.f32 %v784, 0.0
        %v849 = vmax.f32 %v785, 0.0
        %v850 = vmax.f32 %v786, 0.0
        %v851 = vmax.f32 %v787, 0.0
        %v852 = vmax.f32 %v788, 0.0
        %v853 = vmax.f32 %v789, 0.0
        %v854 = vmax.f32 %v790, 0.0
        %v855 = vmax.f32 %v791, 0.0
        %v856 = vmax.f32 %v792, 0.0
        %v857 = vmax.f32 %v793, 0.0
        %v858 = vmax.f32 %v794, 0.0
        %v859 = vmax.f32 %v795, 0.0
        %v860 = vmax.f32 %v796, 0.0
        %v861 = vmax.f32 %v797, 0.0
        %v862 = vmax.f32 %v798, 0.0
        %v863 = vmax.f32 %v799, 0.0
        %v864 = vmax.f32 %v800, 0.0
        %v865 = vmax.f32 %v801, 0.0
        %v866 = vmax.f32 %v802, 0.0
        %v867 = vmax.f32 %v803, 0.0
        %v868 = vmax.f32 %v804, 0.0
        %v869 = vmax.f32 %v805, 0.0
        %v870 = vmax.f32 %v806, 0.0
        %v871 = vmax.f32 %v807, 0.0
        %v872 = vmax.f32 %v808, 0.0
        %v873 = vmax.f32 %v809, 0.0
        %v874 = vmax.f32 %v810, 0.0
        %v875 = vmax.f32 %v811, 0.0
        %v876 = vmax.f32 %v812, 0.0
        %v877 = vmax.f32 %v813, 0.0
        %v878 = vmax.f32 %v814, 0.0
        %v879 = vmax.f32 %v815, 0.0
        %v880 = vmax.f32 %v816, 0.0
        %v881 = vmax.f32 %v817, 0.0
        %v882 = vmax.f32 %v818, 0.0
        %v883 = vmax.f32 %v819, 0.0
        %v884 = vmax.f32 %v820, 0.0
        %v885 = vmax.f32 %v821, 0.0
        %v886 = vmax.f32 %v822, 0.0
        %v887 = vmax.f32 %v823, 0.0
        %v888 = vmax.f32 %v824, 0.0
        %v889 = vmax.f32 %v825, 0.0
        %v890 = vmax.f32 %v826, 0.0
        %891 = vst [vmem:[%s360] sm:$0xff] %v827
        %892 = vst [vmem:[%s360 + $0x8] sm:$0xff] %v828
        %893 = vst [vmem:[%s360 + $0x10] sm:$0xff] %v829
        %894 = vst [vmem:[%s360 + $0x18] sm:$0xff] %v830
        %895 = vst [vmem:[%s360 + $0x20] sm:$0xff] %v831
        %896 = vst [vmem:[%s360 + $0x28] sm:$0xff] %v832
        %897 = vst [vmem:[%s360 + $0x30] sm:$0xff] %v833
        %898 = vst [vmem:[%s360 + $0x38] sm:$0xff] %v834
        %899 = vst [vmem:[%s360 + $0x40] sm:$0xff] %v835
        %900 = vst [vmem:[%s360 + $0x48] sm:$0xff] %v836
        %901 = vst [vmem:[%s360 + $0x50] sm:$0xff] %v837
        %902 = vst [vmem:[%s360 + $0x58] sm:$0xff] %v838
        %903 = vst [vmem:[%s360 + $0x60] sm:$0xff] %v839
        %904 = vst [vmem:[%s360 + $0x68] sm:$0xff] %v840
        %905 = vst [vmem:[%s360 + $0x70] sm:$0xff] %v841
        %906 = vst [vmem:[%s360 + $0x78] sm:$0xff] %v842
        %907 = vst [vmem:[%s360 + $0x80] sm:$0xff] %v843
        %908 = vst [vmem:[%s360 + $0x88] sm:$0xff] %v844
        %909 = vst [vmem:[%s360 + $0x90] sm:$0xff] %v845
        %910 = vst [vmem:[%s360 + $0x98] sm:$0xff] %v846
        %911 = vst [vmem:[%s360 + $0xa0] sm:$0xff] %v847
        %912 = vst [vmem:[%s360 + $0xa8] sm:$0xff] %v848
        %913 = vst [vmem:[%s360 + $0xb0] sm:$0xff] %v849
        %914 = vst [vmem:[%s360 + $0xb8] sm:$0xff] %v850
        %915 = vst [vmem:[%s360 + $0xc0] sm:$0xff] %v851
        %916 = vst [vmem:[%s360 + $0xc8] sm:$0xff] %v852
        %917 = vst [vmem:[%s360 + $0xd0] sm:$0xff] %v853
        %918 = vst [vmem:[%s360 + $0xd8] sm:$0xff] %v854
        %919 = vst [vmem:[%s360 + $0xe0] sm:$0xff] %v855
        %920 = vst [vmem:[%s360 + $0xe8] sm:$0xff] %v856
        %921 = vst [vmem:[%s360 + $0xf0] sm:$0xff] %v857
        %922 = vst [vmem:[%s360 + $0xf8] sm:$0xff] %v858
        %923 = vst [vmem:[%s360 + $0x100] sm:$0xff] %v859
        %924 = vst [vmem:[%s360 + $0x108] sm:$0xff] %v860
        %925 = vst [vmem:[%s360 + $0x110] sm:$0xff] %v861
        %926 = vst [vmem:[%s360 + $0x118] sm:$0xff] %v862
        %927 = vst [vmem:[%s360 + $0x120] sm:$0xff] %v863
        %928 = vst [vmem:[%s360 + $0x128] sm:$0xff] %v864
        %929 = vst [vmem:[%s360 + $0x130] sm:$0xff] %v865
        %930 = vst [vmem:[%s360 + $0x138] sm:$0xff] %v866
        %931 = vst [vmem:[%s360 + $0x140] sm:$0xff] %v867
        %932 = vst [vmem:[%s360 + $0x148] sm:$0xff] %v868
        %933 = vst [vmem:[%s360 + $0x150] sm:$0xff] %v869
        %934 = vst [vmem:[%s360 + $0x158] sm:$0xff] %v870
        %935 = vst [vmem:[%s360 + $0x160] sm:$0xff] %v871
        %936 = vst [vmem:[%s360 + $0x168] sm:$0xff] %v872
        %937 = vst [vmem:[%s360 + $0x170] sm:$0xff] %v873
        %938 = vst [vmem:[%s360 + $0x178] sm:$0xff] %v874
        %939 = vst [vmem:[%s360 + $0x180] sm:$0xff] %v875
        %940 = vst [vmem:[%s360 + $0x188] sm:$0xff] %v876
        %941 = vst [vmem:[%s360 + $0x190] sm:$0xff] %v877
        %942 = vst [vmem:[%s360 + $0x198] sm:$0xff] %v878
        %943 = vst [vmem:[%s360 + $0x1a0] sm:$0xff] %v879
        %944 = vst [vmem:[%s360 + $0x1a8] sm:$0xff] %v880
        %945 = vst [vmem:[%s360 + $0x1b0] sm:$0xff] %v881
        %946 = vst [vmem:[%s360 + $0x1b8] sm:$0xff] %v882
        %947 = vst [vmem:[%s360 + $0x1c0] sm:$0xff] %v883
        %948 = vst [vmem:[%s360 + $0x1c8] sm:$0xff] %v884
        %949 = vst [vmem:[%s360 + $0x1d0] sm:$0xff] %v885
        %950 = vst [vmem:[%s360 + $0x1d8] sm:$0xff] %v886
        %951 = vst [vmem:[%s360 + $0x1e0] sm:$0xff] %v887
        %952 = vst [vmem:[%s360 + $0x1e8] sm:$0xff] %v888
        %953 = vst [vmem:[%s360 + $0x1f0] sm:$0xff] %v889
        %954 = vst [vmem:[%s360 + $0x1f8] sm:$0xff] %v890
        %v955 = vld [vmem:[%s303] sm:$0xff]
        %v956 = vld [vmem:[%s303 + $0x8] sm:$0xff]
        %v957 = vld [vmem:[%s303 + $0x10] sm:$0xff]
        %v958 = vld [vmem:[%s303 + $0x18] sm:$0xff]
        %v959 = vld [vmem:[%s303 + $0x20] sm:$0xff]
        %v960 = vld [vmem:[%s303 + $0x28] sm:$0xff]
        %v961 = vld [vmem:[%s303 + $0x30] sm:$0xff]
        %v962 = vld [vmem:[%s303 + $0x38] sm:$0xff]
        %v963 = vld [vmem:[%s303 + $0x40] sm:$0xff]
        %v964 = vld [vmem:[%s303 + $0x48] sm:$0xff]
        %v965 = vld [vmem:[%s303 + $0x50] sm:$0xff]
        %v966 = vld [vmem:[%s303 + $0x58] sm:$0xff]
        %v967 = vld [vmem:[%s303 + $0x60] sm:$0xff]
        %v968 = vld [vmem:[%s303 + $0x68] sm:$0xff]
        %v969 = vld [vmem:[%s303 + $0x70] sm:$0xff]
        %v970 = vld [vmem:[%s303 + $0x78] sm:$0xff]
        %v971 = vld [vmem:[%s303 + $0x80] sm:$0xff]
        %v972 = vld [vmem:[%s303 + $0x88] sm:$0xff]
        %v973 = vld [vmem:[%s303 + $0x90] sm:$0xff]
        %v974 = vld [vmem:[%s303 + $0x98] sm:$0xff]
        %v975 = vld [vmem:[%s303 + $0xa0] sm:$0xff]
        %v976 = vld [vmem:[%s303 + $0xa8] sm:$0xff]
        %v977 = vld [vmem:[%s303 + $0xb0] sm:$0xff]
        %v978 = vld [vmem:[%s303 + $0xb8] sm:$0xff]
        %v979 = vld [vmem:[%s303 + $0xc0] sm:$0xff]
        %v980 = vld [vmem:[%s303 + $0xc8] sm:$0xff]
        %v981 = vld [vmem:[%s303 + $0xd0] sm:$0xff]
        %v982 = vld [vmem:[%s303 + $0xd8] sm:$0xff]
        %v983 = vld [vmem:[%s303 + $0xe0] sm:$0xff]
        %v984 = vld [vmem:[%s303 + $0xe8] sm:$0xff]
        %v985 = vld [vmem:[%s303 + $0xf0] sm:$0xff]
        %v986 = vld [vmem:[%s303 + $0xf8] sm:$0xff]
        %v987 = vld [vmem:[%s303 + $0x100] sm:$0xff]
        %v988 = vld [vmem:[%s303 + $0x108] sm:$0xff]
        %v989 = vld [vmem:[%s303 + $0x110] sm:$0xff]
        %v990 = vld [vmem:[%s303 + $0x118] sm:$0xff]
        %v991 = vld [vmem:[%s303 + $0x120] sm:$0xff]
        %v992 = vld [vmem:[%s303 + $0x128] sm:$0xff]
        %v993 = vld [vmem:[%s303 + $0x130] sm:$0xff]
        %v994 = vld [vmem:[%s303 + $0x138] sm:$0xff]
        %v995 = vld [vmem:[%s303 + $0x140] sm:$0xff]
        %v996 = vld [vmem:[%s303 + $0x148] sm:$0xff]
        %v997 = vld [vmem:[%s303 + $0x150] sm:$0xff]
        %v998 = vld [vmem:[%s303 + $0x158] sm:$0xff]
        %v999 = vld [vmem:[%s303 + $0x160] sm:$0xff]
        %v1000 = vld [vmem:[%s303 + $0x168] sm:$0xff]
        %v1001 = vld [vmem:[%s303 + $0x170] sm:$0xff]
        %v1002 = vld [vmem:[%s303 + $0x178] sm:$0xff]
        %v1003 = vld [vmem:[%s303 + $0x180] sm:$0xff]
        %v1004 = vld [vmem:[%s303 + $0x188] sm:$0xff]
        %v1005 = vld [vmem:[%s303 + $0x190] sm:$0xff]
        %v1006 = vld [vmem:[%s303 + $0x198] sm:$0xff]
        %v1007 = vld [vmem:[%s303 + $0x1a0] sm:$0xff]
        %v1008 = vld [vmem:[%s303 + $0x1a8] sm:$0xff]
        %v1009 = vld [vmem:[%s303 + $0x1b0] sm:$0xff]
        %v1010 = vld [vmem:[%s303 + $0x1b8] sm:$0xff]
        %v1011 = vld [vmem:[%s303 + $0x1c0] sm:$0xff]
        %v1012 = vld [vmem:[%s303 + $0x1c8] sm:$0xff]
        %v1013 = vld [vmem:[%s303 + $0x1d0] sm:$0xff]
        %v1014 = vld [vmem:[%s303 + $0x1d8] sm:$0xff]
        %v1015 = vld [vmem:[%s303 + $0x1e0] sm:$0xff]
        %v1016 = vld [vmem:[%s303 + $0x1e8] sm:$0xff]
        %v1017 = vld [vmem:[%s303 + $0x1f0] sm:$0xff]
        %v1018 = vld [vmem:[%s303 + $0x1f8] sm:$0xff]
        %v1019 = vmul.f32 %v379, %v955
        %v1020 = vmul.f32 %v380, %v956
        %v1021 = vmul.f32 %v381, %v957
        %v1022 = vmul.f32 %v382, %v958
        %v1023 = vmul.f32 %v383, %v959
        %v1024 = vmul.f32 %v384, %v960
        %v1025 = vmul.f32 %v385, %v961
        %v1026 = vmul.f32 %v386, %v962
        %v1027 = vmul.f32 %v387, %v963
        %v1028 = vmul.f32 %v388, %v964
        %v1029 = vmul.f32 %v389, %v965
        %v1030 = vmul.f32 %v390, %v966
        %v1031 = vmul.f32 %v391, %v967
        %v1032 = vmul.f32 %v392, %v968
        %v1033 = vmul.f32 %v393, %v969
        %v1034 = vmul.f32 %v394, %v970
        %v1035 = vmul.f32 %v395, %v971
        %v1036 = vmul.f32 %v396, %v972
        %v1037 = vmul.f32 %v397, %v973
        %v1038 = vmul.f32 %v398, %v974
        %v1039 = vmul.f32 %v399, %v975
        %v1040 = vmul.f32 %v400, %v976
        %v1041 = vmul.f32 %v401, %v977
        %v1042 = vmul.f32 %v402, %v978
        %v1043 = vmul.f32 %v403, %v979
        %v1044 = vmul.f32 %v404, %v980
        %v1045 = vmul.f32 %v405, %v981
        %v1046 = vmul.f32 %v406, %v982
        %v1047 = vmul.f32 %v407, %v983
        %v1048 = vmul.f32 %v408, %v984
        %v1049 = vmul.f32 %v409, %v985
        %v1050 = vmul.f32 %v410, %v986
        %v1051 = vmul.f32 %v411, %v987
        %v1052 = vmul.f32 %v412, %v988
        %v1053 = vmul.f32 %v413, %v989
        %v1054 = vmul.f32 %v414, %v990
        %v1055 = vmul.f32 %v415, %v991
        %v1056 = vmul.f32 %v416, %v992
        %v1057 = vmul.f32 %v417, %v993
        %v1058 = vmul.f32 %v418, %v994
        %v1059 = vmul.f32 %v419, %v995
        %v1060 = vmul.f32 %v420, %v996
        %v1061 = vmul.f32 %v421, %v997
        %v1062 = vmul.f32 %v422, %v998
        %v1063 = vmul.f32 %v423, %v999
        %v1064 = vmul.f32 %v424, %v1000
        %v1065 = vmul.f32 %v425, %v1001
        %v1066 = vmul.f32 %v426, %v1002
        %v1067 = vmul.f32 %v427, %v1003
        %v1068 = vmul.f32 %v428, %v1004
        %v1069 = vmul.f32 %v429, %v1005
        %v1070 = vmul.f32 %v430, %v1006
        %v1071 = vmul.f32 %v431, %v1007
        %v1072 = vmul.f32 %v432, %v1008
        %v1073 = vmul.f32 %v433, %v1009
        %v1074 = vmul.f32 %v434, %v1010
        %v1075 = vmul.f32 %v435, %v1011
        %v1076 = vmul.f32 %v436, %v1012
        %v1077 = vmul.f32 %v437, %v1013
        %v1078 = vmul.f32 %v438, %v1014
        %v1079 = vmul.f32 %v439, %v1015
        %v1080 = vmul.f32 %v440, %v1016
        %v1081 = vmul.f32 %v441, %v1017
        %v1082 = vmul.f32 %v442, %v1018
        %1083 = vadd.xlane.f32.xlu0 %v1019
        %v1084 = vpop.xlane.xlu0 %1083
        %1085 = vadd.xlane.f32.xlu0 %v1020
        %v1086 = vpop.xlane.xlu0 %1085
        %1087 = vadd.xlane.f32.xlu0 %v1021
        %v1088 = vpop.xlane.xlu0 %1087
        %1089 = vadd.xlane.f32.xlu0 %v1022
        %v1090 = vpop.xlane.xlu0 %1089
        %1091 = vadd.xlane.f32.xlu0 %v1023
        %v1092 = vpop.xlane.xlu0 %1091
        %1093 = vadd.xlane.f32.xlu0 %v1024
        %v1094 = vpop.xlane.xlu0 %1093
        %1095 = vadd.xlane.f32.xlu0 %v1025
        %v1096 = vpop.xlane.xlu0 %1095
        %1097 = vadd.xlane.f32.xlu0 %v1026
        %v1098 = vpop.xlane.xlu0 %1097
        %1099 = vadd.xlane.f32.xlu0 %v1027
        %v1100 = vpop.xlane.xlu0 %1099
        %1101 = vadd.xlane.f32.xlu0 %v1028
        %v1102 = vpop.xlane.xlu0 %1101
        %1103 = vadd.xlane.f32.xlu0 %v1029
        %v1104 = vpop.xlane.xlu0 %1103
        %1105 = vadd.xlane.f32.xlu0 %v1030
        %v1106 = vpop.xlane.xlu0 %1105
        %1107 = vadd.xlane.f32.xlu0 %v1031
        %v1108 = vpop.xlane.xlu0 %1107
        %1109 = vadd.xlane.f32.xlu0 %v1032
        %v1110 = vpop.xlane.xlu0 %1109
        %1111 = vadd.xlane.f32.xlu0 %v1033
        %v1112 = vpop.xlane.xlu0 %1111
        %1113 = vadd.xlane.f32.xlu0 %v1034
        %v1114 = vpop.xlane.xlu0 %1113
        %1115 = vadd.xlane.f32.xlu0 %v1035
        %v1116 = vpop.xlane.xlu0 %1115
        %1117 = vadd.xlane.f32.xlu0 %v1036
        %v1118 = vpop.xlane.xlu0 %1117
        %1119 = vadd.xlane.f32.xlu0 %v1037
        %v1120 = vpop.xlane.xlu0 %1119
        %1121 = vadd.xlane.f32.xlu0 %v1038
        %v1122 = vpop.xlane.xlu0 %1121
        %1123 = vadd.xlane.f32.xlu0 %v1039
        %v1124 = vpop.xlane.xlu0 %1123
        %1125 = vadd.xlane.f32.xlu0 %v1040
        %v1126 = vpop.xlane.xlu0 %1125
        %1127 = vadd.xlane.f32.xlu0 %v1041
        %v1128 = vpop.xlane.xlu0 %1127
        %1129 = vadd.xlane.f32.xlu0 %v1042
        %v1130 = vpop.xlane.xlu0 %1129
        %1131 = vadd.xlane.f32.xlu0 %v1043
        %v1132 = vpop.xlane.xlu0 %1131
        %1133 = vadd.xlane.f32.xlu0 %v1044
        %v1134 = vpop.xlane.xlu0 %1133
        %1135 = vadd.xlane.f32.xlu0 %v1045
        %v1136 = vpop.xlane.xlu0 %1135
        %1137 = vadd.xlane.f32.xlu0 %v1046
        %v1138 = vpop.xlane.xlu0 %1137
        %1139 = vadd.xlane.f32.xlu0 %v1047
        %v1140 = vpop.xlane.xlu0 %1139
        %1141 = vadd.xlane.f32.xlu0 %v1048
        %v1142 = vpop.xlane.xlu0 %1141
        %1143 = vadd.xlane.f32.xlu0 %v1049
        %v1144 = vpop.xlane.xlu0 %1143
        %1145 = vadd.xlane.f32.xlu0 %v1050
        %v1146 = vpop.xlane.xlu0 %1145
        %1147 = vadd.xlane.f32.xlu0 %v1051
        %v1148 = vpop.xlane.xlu0 %1147
        %1149 = vadd.xlane.f32.xlu0 %v1052
        %v1150 = vpop.xlane.xlu0 %1149
        %1151 = vadd.xlane.f32.xlu0 %v1053
        %v1152 = vpop.xlane.xlu0 %1151
        %1153 = vadd.xlane.f32.xlu0 %v1054
        %v1154 = vpop.xlane.xlu0 %1153
        %1155 = vadd.xlane.f32.xlu0 %v1055
        %v1156 = vpop.xlane.xlu0 %1155
        %1157 = vadd.xlane.f32.xlu0 %v1056
        %v1158 = vpop.xlane.xlu0 %1157
        %1159 = vadd.xlane.f32.xlu0 %v1057
        %v1160 = vpop.xlane.xlu0 %1159
        %1161 = vadd.xlane.f32.xlu0 %v1058
        %v1162 = vpop.xlane.xlu0 %1161
        %1163 = vadd.xlane.f32.xlu0 %v1059
        %v1164 = vpop.xlane.xlu0 %1163
        %1165 = vadd.xlane.f32.xlu0 %v1060
        %v1166 = vpop.xlane.xlu0 %1165
        %1167 = vadd.xlane.f32.xlu0 %v1061
        %v1168 = vpop.xlane.xlu0 %1167
        %1169 = vadd.xlane.f32.xlu0 %v1062
        %v1170 = vpop.xlane.xlu0 %1169
        %1171 = vadd.xlane.f32.xlu0 %v1063
        %v1172 = vpop.xlane.xlu0 %1171
        %1173 = vadd.xlane.f32.xlu0 %v1064
        %v1174 = vpop.xlane.xlu0 %1173
        %1175 = vadd.xlane.f32.xlu0 %v1065
        %v1176 = vpop.xlane.xlu0 %1175
        %1177 = vadd.xlane.f32.xlu0 %v1066
        %v1178 = vpop.xlane.xlu0 %1177
        %1179 = vadd.xlane.f32.xlu0 %v1067
        %v1180 = vpop.xlane.xlu0 %1179
        %1181 = vadd.xlane.f32.xlu0 %v1068
        %v1182 = vpop.xlane.xlu0 %1181
        %1183 = vadd.xlane.f32.xlu0 %v1069
        %v1184 = vpop.xlane.xlu0 %1183
        %1185 = vadd.xlane.f32.xlu0 %v1070
        %v1186 = vpop.xlane.xlu0 %1185
        %1187 = vadd.xlane.f32.xlu0 %v1071
        %v1188 = vpop.xlane.xlu0 %1187
        %1189 = vadd.xlane.f32.xlu0 %v1072
        %v1190 = vpop.xlane.xlu0 %1189
        %1191 = vadd.xlane.f32.xlu0 %v1073
        %v1192 = vpop.xlane.xlu0 %1191
        %1193 = vadd.xlane.f32.xlu0 %v1074
        %v1194 = vpop.xlane.xlu0 %1193
        %1195 = vadd.xlane.f32.xlu0 %v1075
        %v1196 = vpop.xlane.xlu0 %1195
        %1197 = vadd.xlane.f32.xlu0 %v1076
        %v1198 = vpop.xlane.xlu0 %1197
        %1199 = vadd.xlane.f32.xlu0 %v1077
        %v1200 = vpop.xlane.xlu0 %1199
        %1201 = vadd.xlane.f32.xlu0 %v1078
        %v1202 = vpop.xlane.xlu0 %1201
        %1203 = vadd.xlane.f32.xlu0 %v1079
        %v1204 = vpop.xlane.xlu0 %1203
        %1205 = vadd.xlane.f32.xlu0 %v1080
        %v1206 = vpop.xlane.xlu0 %1205
        %1207 = vadd.xlane.f32.xlu0 %v1081
        %v1208 = vpop.xlane.xlu0 %1207
        %1209 = vadd.xlane.f32.xlu0 %v1082
        %v1210 = vpop.xlane.xlu0 %1209
        %vm1211 = vcmask 7168
        %1212 = vst.msk [vmem:[%s377] sm:$0xff] %vm1211, %v1084
        %1213 = vst.msk [vmem:[%s377 + $0x8] sm:$0xff] %vm1211, %v1086
        %1214 = vst.msk [vmem:[%s377 + $0x10] sm:$0xff] %vm1211, %v1088
        %1215 = vst.msk [vmem:[%s377 + $0x18] sm:$0xff] %vm1211, %v1090
        %1216 = vst.msk [vmem:[%s377 + $0x20] sm:$0xff] %vm1211, %v1092
        %1217 = vst.msk [vmem:[%s377 + $0x28] sm:$0xff] %vm1211, %v1094
        %1218 = vst.msk [vmem:[%s377 + $0x30] sm:$0xff] %vm1211, %v1096
        %1219 = vst.msk [vmem:[%s377 + $0x38] sm:$0xff] %vm1211, %v1098
        %1220 = vst.msk [vmem:[%s377 + $0x40] sm:$0xff] %vm1211, %v1100
        %1221 = vst.msk [vmem:[%s377 + $0x48] sm:$0xff] %vm1211, %v1102
        %1222 = vst.msk [vmem:[%s377 + $0x50] sm:$0xff] %vm1211, %v1104
        %1223 = vst.msk [vmem:[%s377 + $0x58] sm:$0xff] %vm1211, %v1106
        %1224 = vst.msk [vmem:[%s377 + $0x60] sm:$0xff] %vm1211, %v1108
        %1225 = vst.msk [vmem:[%s377 + $0x68] sm:$0xff] %vm1211, %v1110
        %1226 = vst.msk [vmem:[%s377 + $0x70] sm:$0xff] %vm1211, %v1112
        %1227 = vst.msk [vmem:[%s377 + $0x78] sm:$0xff] %vm1211, %v1114
        %1228 = vst.msk [vmem:[%s377 + $0x80] sm:$0xff] %vm1211, %v1116
        %1229 = vst.msk [vmem:[%s377 + $0x88] sm:$0xff] %vm1211, %v1118
        %1230 = vst.msk [vmem:[%s377 + $0x90] sm:$0xff] %vm1211, %v1120
        %1231 = vst.msk [vmem:[%s377 + $0x98] sm:$0xff] %vm1211, %v1122
        %1232 = vst.msk [vmem:[%s377 + $0xa0] sm:$0xff] %vm1211, %v1124
        %1233 = vst.msk [vmem:[%s377 + $0xa8] sm:$0xff] %vm1211, %v1126
        %1234 = vst.msk [vmem:[%s377 + $0xb0] sm:$0xff] %vm1211, %v1128
        %1235 = vst.msk [vmem:[%s377 + $0xb8] sm:$0xff] %vm1211, %v1130
        %1236 = vst.msk [vmem:[%s377 + $0xc0] sm:$0xff] %vm1211, %v1132
        %1237 = vst.msk [vmem:[%s377 + $0xc8] sm:$0xff] %vm1211, %v1134
        %1238 = vst.msk [vmem:[%s377 + $0xd0] sm:$0xff] %vm1211, %v1136
        %1239 = vst.msk [vmem:[%s377 + $0xd8] sm:$0xff] %vm1211, %v1138
        %1240 = vst.msk [vmem:[%s377 + $0xe0] sm:$0xff] %vm1211, %v1140
        %1241 = vst.msk [vmem:[%s377 + $0xe8] sm:$0xff] %vm1211, %v1142
        %1242 = vst.msk [vmem:[%s377 + $0xf0] sm:$0xff] %vm1211, %v1144
        %1243 = vst.msk [vmem:[%s377 + $0xf8] sm:$0xff] %vm1211, %v1146
        %1244 = vst.msk [vmem:[%s377 + $0x100] sm:$0xff] %vm1211, %v1148
        %1245 = vst.msk [vmem:[%s377 + $0x108] sm:$0xff] %vm1211, %v1150
        %1246 = vst.msk [vmem:[%s377 + $0x110] sm:$0xff] %vm1211, %v1152
        %1247 = vst.msk [vmem:[%s377 + $0x118] sm:$0xff] %vm1211, %v1154
        %1248 = vst.msk [vmem:[%s377 + $0x120] sm:$0xff] %vm1211, %v1156
        %1249 = vst.msk [vmem:[%s377 + $0x128] sm:$0xff] %vm1211, %v1158
        %1250 = vst.msk [vmem:[%s377 + $0x130] sm:$0xff] %vm1211, %v1160
        %1251 = vst.msk [vmem:[%s377 + $0x138] sm:$0xff] %vm1211, %v1162
        %1252 = vst.msk [vmem:[%s377 + $0x140] sm:$0xff] %vm1211, %v1164
        %1253 = vst.msk [vmem:[%s377 + $0x148] sm:$0xff] %vm1211, %v1166
        %1254 = vst.msk [vmem:[%s377 + $0x150] sm:$0xff] %vm1211, %v1168
        %1255 = vst.msk [vmem:[%s377 + $0x158] sm:$0xff] %vm1211, %v1170
        %1256 = vst.msk [vmem:[%s377 + $0x160] sm:$0xff] %vm1211, %v1172
        %1257 = vst.msk [vmem:[%s377 + $0x168] sm:$0xff] %vm1211, %v1174
        %1258 = vst.msk [vmem:[%s377 + $0x170] sm:$0xff] %vm1211, %v1176
        %1259 = vst.msk [vmem:[%s377 + $0x178] sm:$0xff] %vm1211, %v1178
        %1260 = vst.msk [vmem:[%s377 + $0x180] sm:$0xff] %vm1211, %v1180
        %1261 = vst.msk [vmem:[%s377 + $0x188] sm:$0xff] %vm1211, %v1182
        %1262 = vst.msk [vmem:[%s377 + $0x190] sm:$0xff] %vm1211, %v1184
        %1263 = vst.msk [vmem:[%s377 + $0x198] sm:$0xff] %vm1211, %v1186
        %1264 = vst.msk [vmem:[%s377 + $0x1a0] sm:$0xff] %vm1211, %v1188
        %1265 = vst.msk [vmem:[%s377 + $0x1a8] sm:$0xff] %vm1211, %v1190
        %1266 = vst.msk [vmem:[%s377 + $0x1b0] sm:$0xff] %vm1211, %v1192
        %1267 = vst.msk [vmem:[%s377 + $0x1b8] sm:$0xff] %vm1211, %v1194
        %1268 = vst.msk [vmem:[%s377 + $0x1c0] sm:$0xff] %vm1211, %v1196
        %1269 = vst.msk [vmem:[%s377 + $0x1c8] sm:$0xff] %vm1211, %v1198
        %1270 = vst.msk [vmem:[%s377 + $0x1d0] sm:$0xff] %vm1211, %v1200
        %1271 = vst.msk [vmem:[%s377 + $0x1d8] sm:$0xff] %vm1211, %v1202
        %1272 = vst.msk [vmem:[%s377 + $0x1e0] sm:$0xff] %vm1211, %v1204
        %1273 = vst.msk [vmem:[%s377 + $0x1e8] sm:$0xff] %vm1211, %v1206
        %1274 = vst.msk [vmem:[%s377 + $0x1f0] sm:$0xff] %vm1211, %v1208
        %1275 = vst.msk [vmem:[%s377 + $0x1f8] sm:$0xff] %vm1211, %v1210
        %s1276 = sand.u32 %s141, 1
        %s1277 = scalar_lea.sflag [#allocation4], %s1276
        %s1278 = sand.u32 %s141, 1
        %s1279 = smul.addr %s1278, 512
        %s1280 = scalar_lea.vmem [#allocation10], %s1279
        %s1281 = smul.u32 64, %s29
        %p1282 = scmp.lt.s32.totalorder %s1281, 127
        %s1283 = scalar_select %p1282, %s1281, 127
        %s1284 = smul.addr %s1283, 8
        %s1285 = scalar_lea.vmem %s5, %s1284
        // Predicated region
        $region53: #{_node_forward.1} parent=35 // pred_check
          %p1286 = pneg %p151
        $region54: #{_node_forward.1} parent=35 // pred_check_branch
          %1288 = sbr.rel (%p1286) target = $region56
        $region55: #{_node_forward.1} parent=35 // pred_region
          %s1289 = smul.u32 64, %s29
          %s1291 = ssub.s32 8192, 8192
          %1292 = vsyncadd %s1277, %s1291
          %s1293 = smul.addr %s1289, 128
          %s1294 = scalar_lea.hbm %s4, %s1293
          %s1295 = sshll.u32 %s1280, 4
          %s1296 = int_to_ptr.vmem [resolvable:$true] %s1295
          %1301 = dma.vmem_to_hbm [thread:$0]  %s1296, 8192, %s1294, %s1277, 128, 128, 8
        $region56: #{_node_forward.1} parent=35 // pred_fallthru
          _
        // Predicated region
        $region57: #{_node_forward.1} parent=35 // pred_check
          %p1302 = pneg %p177
        $region58: #{_node_forward.1} parent=35 // pred_check_branch
          %1304 = sbr.rel (%p1302) target = $region60
        $region59: #{_node_forward.1} parent=35 // pred_region
          %s1305 = smul.u32 64, %s29
        $region60: #{_node_forward.1} parent=35 // pred_fallthru
          _
      $region36: #{_node_forward.1} parent=5 // pred_fallthru
        _
      %p1306 = scmp.le.s32.totalorder 2, %s24
      // Predicated region
      $region61: #{_node_forward.1} parent=5 // pred_check
        %p1307 = pneg %p1306
      $region62: #{_node_forward.1} parent=5 // pred_check_branch
        %1309 = sbr.rel (%p1307) target = $region64
      $region63: #{_node_forward.1} parent=5 // pred_region
        %s1310 = ssub.s32 %s24, 2
        // Predicated region
        $region65: #{_node_forward.1} parent=63 // pred_check
          %p1311 = pneg %p157
        $region66: #{_node_forward.1} parent=63 // pred_check_branch
          %1313 = sbr.rel (%p1311) target = $region68
        $region67: #{_node_forward.1} parent=63 // pred_region
          %s1314 = sand.u32 %s142, 1
          %s1315 = scalar_lea.sflag [#allocation4], %s1314
          %s1316 = sand.u32 %s142, 1
          %s1317 = smul.addr %s1316, 512
          %s1318 = scalar_lea.vmem [#allocation10], %s1317
          %1319 = dma.done %s1315, 8192
        $region68: #{_node_forward.1} parent=63 // pred_fallthru
          _
        // Predicated region
        $region69: #{_node_forward.1} parent=63 // pred_check
          %p1320 = pneg %p183
        $region70: #{_node_forward.1} parent=63 // pred_check_branch
          %1322 = sbr.rel (%p1320) target = $region72
        $region71: #{_node_forward.1} parent=63 // pred_region
          %s1323 = smul.u32 64, %s30
          %p1324 = scmp.lt.s32.totalorder %s1323, 127
          %s1325 = scalar_select %p1324, %s1323, 127
          %s1326 = smul.addr %s1325, 8
          %s1327 = scalar_lea.vmem %s5, %s1326
        $region72: #{_node_forward.1} parent=63 // pred_fallthru
          _
      $region64: #{_node_forward.1} parent=5 // pred_fallthru
        _
    $region6: #{_node_forward.1} parent=1 // loop_footer
      %s28 = sadd.s32 1, %s24
    $region7: #{_node_forward.1} parent=1 // loop_footer_branch
      %23 = sbr.rel target = $region3
    $region8: #{_node_forward.1} parent=1 // loop_exit
      _
    %1328 = vsyncpa [#allocation3], 1
    %s1329 = scalar_lea.sflag [#allocation3], 1
    %1330 = vsyncpa %s1329, 1
    %1331 = vsyncpa [#allocation6], 1
    %s1332 = scalar_lea.sflag [#allocation6], 1
    %1333 = vsyncpa %s1332, 1
    %1334 = vsyncpa [#allocation9], 1
    %s1335 = scalar_lea.sflag [#allocation9], 1
    %1336 = vsyncpa %s1335, 1
    %1337 = vsyncpa [#allocation4], 1
    %s1338 = scalar_lea.sflag [#allocation4], 1
    %1339 = vsyncpa %s1338, 1

</llo_original>
